<compile_context>
chip_gen: v5e
topology: v5e:2x2
jax: 0.10.0
libtpu: 0.0.40
codegen_flags: <defaults>
</compile_context>

<pallas_src>
import math
import functools

import numpy as np
import jax
import jax.numpy as jnp
from jax.experimental import pallas as pl
from jax.experimental.pallas import tpu as pltpu


# --------------------------------------------------------------------------- #
# helpers
# --------------------------------------------------------------------------- #
def _round_up(x: int, m: int) -> int:
    return ((x + m - 1) // m) * m


def _sublane(dtype_bytes: int) -> int:
    # sublane packing: f32 -> 8 rows, bf16 -> 16, int8/fp8 -> 32
    return max(8, 32 // dtype_bytes)


def _pick_tile_rows(n_rows: int, n_lanes: int, dtype_bytes: int,
                    *, min_grid: int = 4, budget_bytes: int = 2 << 20):
    """Pick (tile_rows, padded_rows).

    tile_rows is a multiple of the sublane pack (or the full padded extent),
    one output buffer stays <= ~budget_bytes, and the grid has >= min_grid
    steps whenever the table is big enough (pipelining + v7x dual-TC sharding).
    """
    sub = _sublane(dtype_bytes)
    max_by_budget = max(sub, (budget_bytes // (n_lanes * dtype_bytes)) // sub * sub)
    max_by_grid = max(sub, _round_up(-(-n_rows // min_grid), sub))
    tile = min(max_by_budget, max_by_grid)
    if n_rows % sub == 0:
        t = tile
        while t >= sub:
            if n_rows % t == 0:
                return t, n_rows
            t -= sub
    tile = min(tile, _round_up(n_rows, sub))
    return tile, _round_up(n_rows, tile)


def _pick_exact_tile_rows(n_rows: int, n_lanes: int, dtype_bytes: int,
                          *, min_grid: int = 4, budget_bytes: int = 2 << 20) -> int:
    """Like _pick_tile_rows but never pads (for the fused path where x can't be padded)."""
    sub = _sublane(dtype_bytes)
    if n_rows % sub != 0:
        return n_rows
    max_by_budget = max(sub, (budget_bytes // (n_lanes * dtype_bytes)) // sub * sub)
    max_by_grid = max(sub, _round_up(-(-n_rows // min_grid), sub))
    t = min(max_by_budget, max_by_grid, (n_rows // sub) * sub)
    while t >= sub:
        if n_rows % t == 0:
            return t
        t -= sub
    return n_rows


def _layout_constants(embed_dim: int, scale: float):
    """Pick a lane-dense layout and build per-lane constants.

    Returns (n_lanes, g, div, phase, posoff) where g = positions per output row
    (flattened layout), and for lane l the table column is l % embed_dim with
    lane-local position offset posoff[l].
    """
    cols = np.arange(embed_dim)
    div = np.exp(-(2.0 * (cols // 2)) * (math.log(scale) / embed_dim))     # f64
    phase = np.where(cols % 2 == 0, 0.0, math.pi / 2.0)                    # sin->cos shift
    if embed_dim % 128 == 0:
        return embed_dim, 1, div, phase, np.zeros((embed_dim,))
    if 128 % embed_dim == 0:
        g = 128 // embed_dim
        return (128, g, np.tile(div, g), np.tile(phase, g),
                np.repeat(np.arange(g), embed_dim).astype(np.float64))
    # general D: pad lanes to a multiple of 128, wrapper slices [:, :D]
    dp = _round_up(embed_dim, 128)
    pad = dp - embed_dim
    return dp, 1, np.pad(div, (0, pad)), np.pad(phase, (0, pad)), np.zeros((dp,))


# --------------------------------------------------------------------------- #
# table kernel (module forward: returns pos_enc[:, -length:])
# --------------------------------------------------------------------------- #
def _pos_enc_kernel(c_ref, o_ref, *, tile_rows, g, sign, base):
    """One (tile_rows, n_lanes) tile: sin(s(R) * a + b).

    s(R) = base + sign * g * R   (R = global output-row index, int32),
    a = c_ref[0] = div_term per lane,
    b = c_ref[1] = phase (+/-) lane-local position offset * div_term.
    """
    i = pl.program_id(0)
    r = jax.lax.broadcasted_iota(jnp.int32, (tile_rows, 1), 0) + i * tile_rows
    s = (base + sign * g * r).astype(jnp.float32)          # exact int -> f32
    angle = s * c_ref[0:1, :] + c_ref[1:2, :]
    o_ref[...] = jnp.sin(angle).astype(o_ref.dtype)


def positional_encoding_forward(x, *, max_len, embed_dim, scale=10000.0,
                                inverted=True, out_dtype=jnp.float32):
    """Equivalent of PositionalEncoding.forward(x): returns (1, L, D) table slice."""
    length = x.shape[1]
    assert length <= max_len, "sequence length exceeds max_len"
    assert embed_dim % 2 == 0, "embed_dim must be even (matches PyTorch module)"
    assert max_len < (1 << 23), "positions must be exactly representable in f32"

    n_lanes, g, div, phase, posoff = _layout_constants(embed_dim, scale)
    sign = -1 if inverted else 1
    base = (length - 1) if inverted else (max_len - length)
    c_const = np.stack([div, phase + sign * posoff * div]).astype(np.float32)  # (2, n_lanes)

    n_rows = -(-length // g)                       # rows of the lane-dense slab
    dtype_bytes = jnp.dtype(out_dtype).itemsize
    tile_rows, padded_rows = _pick_tile_rows(n_rows, n_lanes, dtype_bytes)
    grid = (padded_rows // tile_rows,)

    kernel = functools.partial(_pos_enc_kernel, tile_rows=tile_rows,
                               g=g, sign=sign, base=base)

    slab = pl.pallas_call(
        kernel,
        out_shape=jax.ShapeDtypeStruct((padded_rows, n_lanes), out_dtype),
        grid_spec=pltpu.PrefetchScalarGridSpec(
            num_scalar_prefetch=0,
            grid=grid,
            in_specs=[pl.BlockSpec((2, n_lanes), lambda i: (0, 0))],
            out_specs=pl.BlockSpec((tile_rows, n_lanes), lambda i: (i, 0)),
        ),
        compiler_params=pltpu.CompilerParams(dimension_semantics=("parallel",)),
    )(jnp.asarray(c_const))

    if g > 1:
        slab = slab.reshape(padded_rows * g, embed_dim)
    out = slab[:length, :embed_dim]
    return out.reshape(1, length, embed_dim)


# --------------------------------------------------------------------------- #
# fused variant: out = x + pos_enc[:, -L:]  (saves one HBM pass over x)
# --------------------------------------------------------------------------- #
def _fused_add_kernel(c_ref, x_ref, o_ref, *, tile_rows, g, sign, base):
    j = pl.program_id(1)
    r = jax.lax.broadcasted_iota(jnp.int32, (tile_rows, 1), 0) + j * tile_rows
    s = (base + sign * g * r).astype(jnp.float32)
    pe = jnp.sin(s * c_ref[0:1, :] + c_ref[1:2, :])
    o_ref[...] = (x_ref[...].astype(jnp.float32) + pe).astype(o_ref.dtype)


def positional_encoding_add(x, *, max_len, embed_dim, scale=10000.0, inverted=True):
    """Fused x + PositionalEncoding.forward(x), shape (B, L, D)."""
    B, length, D = x.shape
    assert D == embed_dim and length <= max_len and embed_dim % 2 == 0
    assert max_len < (1 << 23)

    sign = -1 if inverted else 1
    base = (length - 1) if inverted else (max_len - length)

    cols = np.arange(embed_dim)
    div = np.exp(-(2.0 * (cols // 2)) * (math.log(scale) / embed_dim))
    phase = np.where(cols % 2 == 0, 0.0, math.pi / 2.0)

    # Lane-dense layouts that are free reshapes of x (no HBM copy of x allowed).
    if embed_dim % 128 == 0:
        n_lanes, g = embed_dim, 1
        x2 = x
        posoff = np.zeros((n_lanes,))
    elif 128 % embed_dim == 0 and (length * embed_dim) % 128 == 0:
        g = 128 // embed_dim
        n_lanes = 128
        x2 = x.reshape(B, (length * embed_dim) // 128, 128)
        div = np.tile(div, g)
        phase = np.tile(phase, g)
        posoff = np.repeat(np.arange(g), embed_dim).astype(np.float64)
    else:
        # Fallback: last dim = D (full extent) — correct, possibly masked stores,
        # since padding x's lanes would cost an extra HBM copy of x.
        n_lanes, g = embed_dim, 1
        x2 = x
        posoff = np.zeros((n_lanes,))

    c_const = np.stack([div, phase + sign * posoff * div]).astype(np.float32)

    n_rows = x2.shape[1]
    tile_rows = _pick_exact_tile_rows(n_rows, n_lanes, jnp.dtype(x.dtype).itemsize)
    grid = (B, n_rows // tile_rows)

    kernel = functools.partial(_fused_add_kernel, tile_rows=tile_rows,
                               g=g, sign=sign, base=base)

    out2 = pl.pallas_call(
        kernel,
        out_shape=jax.ShapeDtypeStruct(x2.shape, x.dtype),
        grid_spec=pltpu.PrefetchScalarGridSpec(
            num_scalar_prefetch=0,
            grid=grid,
            in_specs=[
                pl.BlockSpec((2, n_lanes), lambda b, j: (0, 0)),
                pl.BlockSpec((None, tile_rows, n_lanes), lambda b, j: (b, j, 0)),
            ],
            out_specs=pl.BlockSpec((None, tile_rows, n_lanes), lambda b, j: (b, j, 0)),
        ),
        compiler_params=pltpu.CompilerParams(
            dimension_semantics=("parallel", "parallel")),
    )(jnp.asarray(c_const), x2)

    return out2.reshape(B, length, embed_dim)


# --------------------------------------------------------------------------- #
# pure-JAX reference (PyTorch buffer construction + slice)
# --------------------------------------------------------------------------- #
def _reference(length, max_len, embed_dim, scale, inverted):
    if inverted:
        position = jnp.arange(max_len - 1, -1, -1, dtype=jnp.float32)[:, None]
    else:
        position = jnp.arange(max_len, dtype=jnp.float32)[:, None]
    div_term = jnp.exp(
        jnp.arange(0, embed_dim, 2, dtype=jnp.float32) * -(math.log(scale) / embed_dim))
    pos_enc = jnp.zeros((max_len, embed_dim), jnp.float32)
    pos_enc = pos_enc.at[:, 0::2].set(jnp.sin(position * div_term))
    pos_enc = pos_enc.at[:, 1::2].set(jnp.cos(position * div_term))
    return pos_enc[None][:, -length:]


if __name__ == "__main__":
    key = jax.random.PRNGKey(0)
    B, SCALE = 2, 10000.0

    # case 1: embed_dim < 128 (flattened lane-dense path), inverted=True
    MAX_LEN, D, L, INV = 64, 32, 8, True
    x = jax.random.normal(key, (B, L, D), dtype=jnp.float32)
    out = jax.block_until_ready(positional_encoding_forward(
        x, max_len=MAX_LEN, embed_dim=D, scale=SCALE, inverted=INV))
    ref = _reference(L, MAX_LEN, D, SCALE, INV)
    assert out.shape == (1, L, D), out.shape
    assert jnp.allclose(out, ref, atol=1e-5, rtol=1e-5), "mismatch (case 1)"

    # case 2: embed_dim = 128 (natively lane-dense), inverted=False, grid > 1
    MAX_LEN2, D2, L2, INV2 = 32, 128, 16, False
    x2 = jax.random.normal(key, (B, L2, D2), dtype=jnp.float32)
    out2 = jax.block_until_ready(positional_encoding_forward(
        x2, max_len=MAX_LEN2, embed_dim=D2, scale=SCALE, inverted=INV2))
    ref2 = _reference(L2, MAX_LEN2, D2, SCALE, INV2)
    assert out2.shape == (1, L2, D2), out2.shape
    assert jnp.allclose(out2, ref2, atol=1e-5, rtol=1e-5), "mismatch (case 2)"

    # case 3: embed_dim = 192 (padded-lane path, sliced in wrapper), inverted=True
    MAX_LEN3, D3, L3, INV3 = 64, 192, 24, True
    x3 = jax.random.normal(key, (B, L3, D3), dtype=jnp.float32)
    out3 = jax.block_until_ready(positional_encoding_forward(
        x3, max_len=MAX_LEN3, embed_dim=D3, scale=SCALE, inverted=INV3))
    ref3 = _reference(L3, MAX_LEN3, D3, SCALE, INV3)
    assert out3.shape == (1, L3, D3), out3.shape
    assert jnp.allclose(out3, ref3, atol=1e-5, rtol=1e-5), "mismatch (case 3)"

    # case 4: fused x + pos_enc (removes the extra HBM pass over x)
    out4 = jax.block_until_ready(positional_encoding_add(
        x2, max_len=MAX_LEN2, embed_dim=D2, scale=SCALE, inverted=True))
    ref4 = x2 + _reference(L2, MAX_LEN2, D2, SCALE, True)
    assert out4.shape == (B, L2, D2), out4.shape
    assert jnp.allclose(out4, ref4, atol=1e-5, rtol=1e-5), "mismatch (case 4, fused)"

    print("KERNEL_OK")
</pallas_src>

<mosaic_0001>
module attributes {stable_mosaic.version = 11 : i64} {
  func.func @_pos_enc_kernel(%arg0: i32, %arg1: memref<2x128xf32, #tpu.memory_space<vmem>>, %arg2: memref<8x128xf32, #tpu.memory_space<vmem>>) attributes {dimension_semantics = [#tpu.dimension_semantics<parallel>], iteration_bounds = array<i64: 1>, scalar_prefetch = 0 : i64, scratch_operands = 0 : i64, tpu.core_type = #tpu.core_type<tc>, window_params = [{pipeline_mode = #tpu.pipeline_mode<synchronous>, transform_indices = @transform_0, window_bounds = array<i64: 2, 128>}, {transform_indices = @transform_1, window_bounds = array<i64: 8, 128>}]} {
    %0 = tpu.iota {dimensions = array<i32: 0>} : vector<8x1xi32>
    %c8_i32 = arith.constant 8 : i32
    %1 = arith.muli %arg0, %c8_i32 : i32
    %2 = vector.broadcast %1 : i32 to vector<8x1xi32>
    %3 = arith.addi %0, %2 : vector<8x1xi32>
    %c-4_i32 = arith.constant -4 : i32
    %4 = vector.broadcast %c-4_i32 : i32 to vector<8x1xi32>
    %5 = arith.muli %4, %3 : vector<8x1xi32>
    %c7_i32 = arith.constant 7 : i32
    %6 = vector.broadcast %c7_i32 : i32 to vector<8x1xi32>
    %7 = arith.addi %6, %5 : vector<8x1xi32>
    %8 = arith.sitofp %7 : vector<8x1xi32> to vector<8x1xf32>
    %c0 = arith.constant 0 : index
    %c0_0 = arith.constant 0 : index
    %9 = vector.load %arg1[%c0, %c0_0] : memref<2x128xf32, #tpu.memory_space<vmem>>, vector<1x128xf32>
    %10 = vector.broadcast %8 : vector<8x1xf32> to vector<8x128xf32>
    %11 = vector.broadcast %9 : vector<1x128xf32> to vector<8x128xf32>
    %12 = arith.mulf %10, %11 : vector<8x128xf32>
    %c1 = arith.constant 1 : index
    %c0_1 = arith.constant 0 : index
    %13 = vector.load %arg1[%c1, %c0_1] : memref<2x128xf32, #tpu.memory_space<vmem>>, vector<1x128xf32>
    %14 = vector.broadcast %13 : vector<1x128xf32> to vector<8x128xf32>
    %15 = arith.addf %12, %14 : vector<8x128xf32>
    %16 = math.sin %15 : vector<8x128xf32>
    %c0_2 = arith.constant 0 : index
    %c0_3 = arith.constant 0 : index
    %17 = vector.load %arg2[%c0_2, %c0_3] : memref<8x128xf32, #tpu.memory_space<vmem>>, vector<8x128xf32>
    tpu.vector_store %arg2[%c0_2, %c0_3], %16 {strides = array<i32>} : memref<8x128xf32, #tpu.memory_space<vmem>>, vector<8x128xf32>,
    return
  }
  func.func @transform_0(%arg0: i32) -> (i32, i32) {
    %c0_i32 = arith.constant 0 : i32
    %c0_i32_0 = arith.constant 0 : i32
    %c0_i32_1 = arith.constant 0 : i32
    return %c0_i32, %c0_i32_0 : i32, i32
  }
  func.func @transform_1(%arg0: i32) -> (i32, i32) {
    %c0_i32 = arith.constant 0 : i32
    %c0_i32_0 = arith.constant 0 : i32
    return %arg0, %c0_i32 : i32, i32
  }
}

</mosaic_0001>

<llo_original>
// kernel: tpu_custom_call.1
$region0: #{tpu_custom_call.1}
  #allocation0 [shape = 'u32[]', space=smem, size = 0x4, offset = 0x4, fixed_abs, tag = 'smem constant byte address 0x4 - core index']
  #allocation1 [shape = 'u32[72,128]{1,0:T(1,128)}', space=vmem, size = 0x9000, scoped, tag = 'internal scratch']
  %s0 = inlined_call_operand.hbm [shape: f32[2,128], index: 0, kind: input, shape index: {}]
  %s1 = inlined_call_operand.hbm [shape: f32[8,128], index: 1, kind: output, shape index: {}]
  %s2 = sld [smem:[#allocation0]]
  $region18: #{tpu_custom_call.1} parent=0
    _
  %s4 = ssub.s32 1, %s2
  %s5 = scalar_select 0, %s4, %s2
  $region1: #{tpu_custom_call.1} parent=0
    #allocation2 [shape = 'u8[1024]{0}', space=vmem, size = 0x400, scoped, tag = 'input window, operand 0, single buffered']
    #allocation3 [shape = 's32[1]{0}', space=sflag, size = 0x4, scoped, tag = 'scoped memory for tpu_custom_call.1']
    #allocation4 [shape = 's32[1]{0}', space=sflag, size = 0x4, scoped, tag = 'scoped memory for tpu_custom_call.1']
    #allocation5 [shape = 'u8[4096]{0}', space=vmem, size = 0x1000, scoped, tag = 'output window, operand 0, single buffered']
    %6 = vsyncpa [#allocation3], 0
    %7 = vsyncpa [#allocation4], 0
    // Predicated region
    $region2: #{tpu_custom_call.1} parent=1 // pred_check
      _
    $region3: #{tpu_custom_call.1} parent=1 // pred_check_branch
      %9 = sbr.rel (0) target = $region5
    $region4: #{tpu_custom_call.1} parent=1 // pred_region
      %11 = vsyncadd [#allocation3], 0
      %s13 = sshll.u32 %s0, 4
      %s14 = int_to_ptr.hbm [resolvable:$true] %s13
      %s15 = sshll.u32 [#allocation2], 4
      %s16 = int_to_ptr.vmem [resolvable:$true] %s15
      %18 = dma.hbm_to_vmem [thread:$0]  %s14, 32, %s16, [#allocation3]
    $region5: #{tpu_custom_call.1} parent=1 // pred_fallthru
      _
    // Predicated region
    $region6: #{tpu_custom_call.1} parent=1 // pred_check
      _
    $region7: #{tpu_custom_call.1} parent=1 // pred_check_branch
      %20 = sbr.rel (0) target = $region9
    $region8: #{tpu_custom_call.1} parent=1 // pred_region
      %22 = dma.done [#allocation3], 32
    $region9: #{tpu_custom_call.1} parent=1 // pred_fallthru
      _
    %v23 = vlaneseq
    %v24 = vshrl.u32 %v23, 7
    %s25 = smul.u32 0, 8
    %v26 = vstv %s25
    %v27 = vadd.s32 %v24, %v26
    %v28 = vmul.u32 %v27, 4294967292
    %v29 = vadd.s32 %v28, 7
    %v30 = vcvt.s32.f32 %v29
    %v31 = vld [vmem:[#allocation2] sm:$0x1]
    %v32 = vperm.slane %v31, 0
    %v33 = vmul.f32 %v30, %v32
    %v34 = vld [vmem:[#allocation2 + $0x1] sm:$0x1]
    %v35 = vperm.slane %v34, 0
    %v36 = vadd.f32 %v33, %v35
    %v37 = vand.u32 2147483647, %v36
    %vm38 = vcmp.le.f32.partialorder %v37, 0.7853982
    %vm39 = vcmp.lt.s32.totalorder %v36, 0
    %v40 = vand.u32 %v36, 2139095040
    %v41 = vshrl.u32 %v40, 23
    %v42 = vsub.s32 %v41, 127
    %v43 = vand.u32 2147483647, %v36
    %v44 = vand.u32 %v43, 8388607
    %v45 = vor.u32 %v44, 8388608
    %v46 = vsub.s32 0, %v45
    %v47 = vadd.s32 %v42, 1
    %vm48 = vcmp.gt.s32.totalorder %v47, 0
    %v49 = vsel %vm48, %v47, 0
    %v50 = vshrl.u32 %v49, 5
    %v51 = vand.u32 %v49, 31
    %v52 = vsub.s32 32, %v51
    %v53 = vshrl.u32 683565275, %v52
    %v54 = vshll.u32 683565275, %v51
    %v55 = vshrl.u32 2475754826, %v52
    %v56 = vor.u32 %v54, %v55
    %v57 = vshll.u32 2475754826, %v51
    %v58 = vshrl.u32 2131351028, %v52
    %v59 = vor.u32 %v57, %v58
    %v60 = vshll.u32 2131351028, %v51
    %v61 = vshrl.u32 2102212464, %v52
    %v62 = vor.u32 %v60, %v61
    %v63 = vshll.u32 2102212464, %v51
    %v64 = vshrl.u32 920167782, %v52
    %v65 = vor.u32 %v63, %v64
    %v66 = vshll.u32 920167782, %v51
    %v67 = vshrl.u32 1326507024, %v52
    %v68 = vor.u32 %v66, %v67
    %vm69 = vcmp.lt.s32.totalorder %v50, 1
    %vm70 = vcmp.lt.s32.totalorder %v50, 2
    %vm71 = vcmp.lt.s32.totalorder %v50, 3
    %vm72 = vcmp.lt.s32.totalorder %v50, 4
    %v73 = vsel %vm69, %v53, %v56
    %v74 = vsel %vm72, %v62, 2102212464
    %v75 = vsel %vm71, %v59, %v74
    %v76 = vsel %vm70, %v73, %v75
    %v77 = vsel %vm69, %v56, %v59
    %v78 = vsel %vm72, %v65, 920167782
    %v79 = vsel %vm71, %v62, %v78
    %v80 = vsel %vm70, %v77, %v79
    %v81 = vsel %vm69, %v59, %v62
    %v82 = vsel %vm72, %v68, 1326507024
    %v83 = vsel %vm71, %v65, %v82
    %v84 = vsel %vm70, %v81, %v83
    %v85 = vshll.u32 %v45, 8
    %v86 = vand.u32 %v85, 65535
    %v87 = vshrl.u32 %v85, 16
    %v88 = vand.u32 %v84, 65535
    %v89 = vshrl.u32 %v84, 16
    %v90 = vmul.u32 %v86, %v88
    %v91 = vmul.u32 %v86, %v89
    %v92 = vmul.u32 %v87, %v88
    %v93 = vmul.u32 %v87, %v89
    %v94 = vshll.u32 %v91, 16
    %v95 = vshrl.u32 %v91, 16
    %v96 = vshll.u32 %v92, 16
    %v97 = vshrl.u32 %v92, 16
    %vm98 = vc.u32 %v90, %v94
    %v99 = vsel %vm98, 1, 0
    %v100 = vadd.s32 %v90, %v94
    %v101 = vadd.s32 %v93, %v99
    %vm102 = vc.u32 %v100, %v96
    %v103 = vsel %vm102, 1, 0
    %v104 = vadd.s32 %v100, %v96
    %v105 = vadd.s32 %v101, %v103
    %v106 = vadd.s32 %v105, %v95
    %v107 = vadd.s32 %v106, %v97
    %v108 = vand.u32 %v85, 65535
    %v109 = vshrl.u32 %v85, 16
    %v110 = vand.u32 %v80, 65535
    %v111 = vshrl.u32 %v80, 16
    %v112 = vmul.u32 %v108, %v110
    %v113 = vmul.u32 %v108, %v111
    %v114 = vmul.u32 %v109, %v110
    %v115 = vmul.u32 %v109, %v111
    %v116 = vshll.u32 %v113, 16
    %v117 = vshrl.u32 %v113, 16
    %v118 = vshll.u32 %v114, 16
    %v119 = vshrl.u32 %v114, 16
    %vm120 = vc.u32 %v112, %v116
    %v121 = vsel %vm120, 1, 0
    %v122 = vadd.s32 %v112, %v116
    %v123 = vadd.s32 %v115, %v121
    %vm124 = vc.u32 %v122, %v118
    %v125 = vsel %vm124, 1, 0
    %v126 = vadd.s32 %v122, %v118
    %v127 = vadd.s32 %v123, %v125
    %v128 = vadd.s32 %v127, %v117
    %v129 = vadd.s32 %v128, %v119
    %v130 = vmul.u32 %v85, %v76
    %v131 = vadd.s32 %v107, %v126
    %vm132 = vc.u32 %v107, %v126
    %v133 = vadd.s32 %v129, 1
    %v134 = vsel %vm132, %v133, %v129
    %v135 = vadd.s32 %v130, %v134
    %v136 = vadd.s32 %v135, 536870912
    %v137 = vshrl.u32 %v136, 30
    %v138 = vshll.u32 %v137, 30
    %v139 = vsub.s32 %v135, %v138
    %vm140 = vcmp.lt.s32.totalorder %v139, 0
    %v141 = vsub.s32 0, %v139
    %v142 = vsel %vm140, %v141, %v139
    %v143 = vclz %v142
    %v144 = vsub.s32 %v143, 2
    %vm145 = vcmp.gt.s32.totalorder 0, %v144
    %v146 = vsel %vm145, 0, %v144
    %v147 = vsub.s32 32, %v146
    %v148 = vshll.u32 %v139, %v146
    %v149 = vshrl.u32 %v131, %v147
    %v150 = vor.u32 %v148, %v149
    %v151 = vsub.s32 4294967266, %v146
    %v152 = vadd.s32 %v151, 127
    %v153 = vshll.u32 %v152, 23
    %v154 = vor.u32 4788187, %v153
    %v155 = vand.u32 2147483647, %v154
    %v157 = vcvt.s32.f32 %v150
    %v158 = vmul.f32 %v157, %v155
    %v159 = vxor.u32 %v158, 2147483648
    %v160 = vsel %vm39, %v159, %v158
    %v161 = vsub.s32 4, %v137
    %v162 = vsel %vm39, %v161, %v137
    %v163 = vsel %vm38, %v36, %v160
    %v164 = vsel %vm38, 0, %v162
    %v165 = vmul.f32 %v163, %v163
    %v166 = vmul.f32 %v165, -0.001358992
    %v167 = vadd.f32 %v166, 0.041655596
    %v168 = vmul.f32 %v165, %v167
    %v169 = vadd.f32 %v168, -0.4999988
    %v170 = vmul.f32 %v165, %v169
    %v171 = vadd.f32 1.0, %v170
    %v172 = vmul.f32 %v163, %v163
    %v173 = vmul.f32 %v172, -0.00019511016
    %v174 = vadd.f32 %v173, 0.008332121
    %v175 = vmul.f32 %v172, %v174
    %v176 = vadd.f32 %v175, -0.16666654
    %v177 = vmul.f32 %v172, %v176
    %v178 = vadd.f32 %v177, 1.0
    %v179 = vmul.f32 %v178, %v163
    %vm180 = vweird.f32 %v36
    %v181 = vadd.s32 %v164, 3
    %v182 = vand.u32 %v181, 3
    %vm183 = vcmp.lt.s32.totalorder %v182, 2
    %vm184 = vcmp.eq.s32.totalorder %v182, 0
    %v185 = vxor.u32 %v179, 2147483648
    %v186 = vsel %vm184, %v171, %v185
    %vm187 = vcmp.eq.s32.totalorder %v182, 2
    %v188 = vxor.u32 %v171, 2147483648
    %v189 = vsel %vm187, %v188, %v179
    %v190 = vsel %vm183, %v186, %v189
    %v191 = vsel %vm180, nan, %v190
    %192 = vst [vmem:[#allocation5] sm:$0xff] %v191
    // Predicated region
    $region10: #{tpu_custom_call.1} parent=1 // pred_check
      _
    $region11: #{tpu_custom_call.1} parent=1 // pred_check_branch
      %194 = sbr.rel (0) target = $region13
    $region12: #{tpu_custom_call.1} parent=1 // pred_region
      %196 = vsyncadd [#allocation4], 0
      %s198 = sshll.u32 [#allocation5], 4
      %s199 = int_to_ptr.vmem [resolvable:$true] %s198
      %s200 = sshll.u32 %s1, 4
      %s201 = int_to_ptr.hbm [resolvable:$true] %s200
      %203 = dma.vmem_to_hbm [thread:$0]  %s199, 128, %s201, [#allocation4]
    $region13: #{tpu_custom_call.1} parent=1 // pred_fallthru
      _
    // Predicated region
    $region14: #{tpu_custom_call.1} parent=1 // pred_check
      _
    $region15: #{tpu_custom_call.1} parent=1 // pred_check_branch
      %205 = sbr.rel (0) target = $region17
    $region16: #{tpu_custom_call.1} parent=1 // pred_region
      %207 = dma.done [#allocation4], 128
    $region17: #{tpu_custom_call.1} parent=1 // pred_fallthru
      _
    %208 = vsyncpa [#allocation3], 1
    %209 = vsyncpa [#allocation4], 1

</llo_original>
